<compile_context>
chip_gen: v6e
topology: v6e:2x2x1
jax: 0.10.0
libtpu: 0.0.40
codegen_flags: <defaults>
</compile_context>

<pallas_src>
import functools

import jax
import jax.numpy as jnp
from jax.experimental import pallas as pl
from jax.experimental.pallas import tpu as pltpu


# --------------------------------------------------------------------------
# Kernels
# --------------------------------------------------------------------------
def _class_block_kernel_fused(x_ref, w_ref, b_ref, o_ref, *,
                              negative_slope, apply_relu):
    """Single-K-block path: whole reduction in one MXU pass.

    x_ref: (tm, Kp)  bf16 activation tile
    w_ref: (Kp, tn)  bf16 weight tile (already [K, N] layout)
    b_ref: (1,  tn)  f32 bias tile
    o_ref: (tm, tn)  f32 output tile
    """
    x = x_ref[...]
    if apply_relu:
        # LeakyReLU fused in bf16 (packed VPU on v6e/v7x; Mosaic upcasts on v5e).
        x = jnp.where(x >= 0, x, x * jnp.asarray(negative_slope, x.dtype))
    o_ref[...] = (jnp.dot(x, w_ref[...], preferred_element_type=jnp.float32)
                  + b_ref[...]).astype(o_ref.dtype)


def _class_block_kernel_ktiled(x_ref, w_ref, b_ref, o_ref, *,
                               negative_slope, apply_relu):
    """K-tiled path: accumulate directly into the resident f32 output block.

    grid = (M blocks, N blocks, K blocks); the output index_map ignores the
    K axis so o_ref stays resident in VMEM across it (no scratch needed).
    """
    kk = pl.program_id(2)

    x = x_ref[...]
    if apply_relu:
        x = jnp.where(x >= 0, x, x * jnp.asarray(negative_slope, x.dtype))
    partial = jnp.dot(x, w_ref[...], preferred_element_type=jnp.float32)

    @pl.when(kk == 0)
    def _():
        o_ref[...] = partial + b_ref[...]

    @pl.when(kk > 0)
    def _():
        o_ref[...] += partial


# --------------------------------------------------------------------------
# Wrapper
# --------------------------------------------------------------------------
def _round_up(x, m):
    return (x + m - 1) // m * m


def _pick_tiles(m, k, n):
    """Tile sizes for the (M, K) x (K, N) GEMM.

    - Collapse K into one block whenever it fits comfortably in VMEM
      (bf16 tiles, double buffered: even Kp=2048 with tm=256/tn=512 is
      only a few MiB, well under v7x's 64 MiB / 32 MiB scoped default).
    - Keep tn=128 for small class_num so the N axis has >=2 parallel
      blocks (v7x megacore sharding); grow for large class_num.
    """
    tm = min(256, _round_up(m, 8))

    kp = _round_up(k, 128)
    tk = kp if kp <= 2048 else 512

    np128 = _round_up(n, 128)
    tn = 128 if np128 <= 512 else 512
    return tm, tn, tk


def prepare_class_block_params(weight, bias):
    """One-time weight/bias preparation (hoisted out of the forward path).

    weight: [class_num, input_dim] (PyTorch nn.Linear layout, f32)
    bias:   [class_num]            (f32)
    Returns (w_p, b_p): bf16 [Kp, Np] weight and f32 [1, Np] bias, padded to
    tile multiples.
    """
    n, k = weight.shape
    _, tn, tk = _pick_tiles(8, k, n)            # tn/tk do not depend on M
    kp, np_ = _round_up(k, tk), _round_up(n, tn)
    w_p = jnp.pad(weight.T.astype(jnp.bfloat16), ((0, kp - k), (0, np_ - n)))
    b_p = jnp.pad(bias.astype(jnp.float32), (0, np_ - n)).reshape(1, np_)
    return w_p, b_p


@functools.partial(jax.jit,
                   static_argnames=("class_num", "negative_slope",
                                    "apply_relu"))
def class_block_forward(x, w_p, b_p, *, class_num, negative_slope=0.1,
                        apply_relu=True):
    """ClassBlock.forward: LeakyReLU(0.1) -> (Dropout: eval no-op) -> Linear.

    x:   [M, input_dim]  (f32)
    w_p: [Kp, Np]        (bf16, from prepare_class_block_params)
    b_p: [1, Np]         (f32,  from prepare_class_block_params)
    returns [M, class_num] (f32)
    """
    m, k = x.shape
    kp, np_ = w_p.shape
    tm, tn, tk = _pick_tiles(m, k, class_num)
    mp = _round_up(m, tm)

    # Only x's cast/pad remains on the per-call path.  Zero padding is
    # harmless: LeakyReLU(0) = 0 and padded weight rows/cols are zero.
    x_p = jnp.pad(x.astype(jnp.bfloat16), ((0, mp - m), (0, kp - k)))

    if kp == tk:
        # ---- single K block: no accumulator, no phases -------------------
        kern = functools.partial(_class_block_kernel_fused,
                                 negative_slope=negative_slope,
                                 apply_relu=apply_relu)
        out_p = pl.pallas_call(
            kern,
            grid_spec=pltpu.PrefetchScalarGridSpec(
                num_scalar_prefetch=0,
                grid=(mp // tm, np_ // tn),
                in_specs=[
                    pl.BlockSpec((tm, kp), lambda i, j: (i, 0)),
                    pl.BlockSpec((kp, tn), lambda i, j: (0, j)),
                    pl.BlockSpec((1, tn), lambda i, j: (0, j)),
                ],
                out_specs=pl.BlockSpec((tm, tn), lambda i, j: (i, j)),
            ),
            out_shape=jax.ShapeDtypeStruct((mp, np_), jnp.float32),
            compiler_params=pltpu.CompilerParams(
                dimension_semantics=("parallel", "parallel")),
        )(x_p, w_p, b_p)
    else:
        # ---- K tiled: accumulate into the resident output block ----------
        kern = functools.partial(_class_block_kernel_ktiled,
                                 negative_slope=negative_slope,
                                 apply_relu=apply_relu)
        out_p = pl.pallas_call(
            kern,
            grid_spec=pltpu.PrefetchScalarGridSpec(
                num_scalar_prefetch=0,
                grid=(mp // tm, np_ // tn, kp // tk),
                in_specs=[
                    pl.BlockSpec((tm, tk), lambda i, j, kk: (i, kk)),
                    pl.BlockSpec((tk, tn), lambda i, j, kk: (kk, j)),
                    pl.BlockSpec((1, tn), lambda i, j, kk: (0, j)),
                ],
                out_specs=pl.BlockSpec((tm, tn), lambda i, j, kk: (i, j)),
            ),
            out_shape=jax.ShapeDtypeStruct((mp, np_), jnp.float32),
            compiler_params=pltpu.CompilerParams(
                dimension_semantics=("parallel", "parallel", "arbitrary")),
        )(x_p, w_p, b_p)

    return out_p[:m, :class_num]


# --------------------------------------------------------------------------
if __name__ == "__main__":
    key = jax.random.PRNGKey(0)
    kx, kw = jax.random.split(key)

    # Small shapes consistent with ClassBlock(input_dim, class_num):
    # feature vectors [batch, input_dim] -> logits [batch, class_num].
    batch, input_dim, class_num = 6, 512, 200

    x = jax.random.normal(kx, (batch, input_dim), jnp.float32)
    # weights_init_classifier: Linear weight ~ N(0, 0.001), bias = 0.
    weight = 0.001 * jax.random.normal(kw, (class_num, input_dim), jnp.float32)
    bias = jnp.zeros((class_num,), jnp.float32)

    # Weight/bias prep hoisted out of the forward path (done once).
    w_p, b_p = prepare_class_block_params(weight, bias)

    out = class_block_forward(x, w_p, b_p, class_num=class_num)
    out = jax.block_until_ready(out)

    # Reference mirroring the kernel's bf16 compute path (eval-mode dropout
    # is identity; LeakyReLU and matmul inputs in bf16, f32 accumulation).
    xq = x.astype(jnp.bfloat16)
    slope = jnp.asarray(0.1, jnp.bfloat16)
    act = jnp.where(xq >= 0, xq, xq * slope).astype(jnp.float32)
    wq = weight.T.astype(jnp.bfloat16).astype(jnp.float32)
    ref = jnp.dot(act, wq, precision=jax.lax.Precision.HIGHEST) + bias[None, :]

    assert out.shape == (batch, class_num), out.shape
    assert bool(jnp.all(jnp.isfinite(out)))
    max_err = float(jnp.max(jnp.abs(out - ref)))
    assert max_err < 1e-3, max_err
    print("KERNEL_OK")
</pallas_src>

<mosaic_0001>
module attributes {stable_mosaic.version = 11 : i64} {
  func.func @_class_block_kernel_fused(%arg0: i32, %arg1: i32, %arg2: memref<8x512xbf16, #tpu.memory_space<vmem>>, %arg3: memref<512x128xbf16, #tpu.memory_space<vmem>>, %arg4: memref<1x128xf32, #tpu.memory_space<vmem>>, %arg5: memref<8x128xf32, #tpu.memory_space<vmem>>) attributes {dimension_semantics = [#tpu.dimension_semantics<parallel>, #tpu.dimension_semantics<parallel>], iteration_bounds = array<i64: 1, 2>, scalar_prefetch = 0 : i64, scratch_operands = 0 : i64, tpu.core_type = #tpu.core_type<tc>, window_params = [{transform_indices = @transform_0, window_bounds = array<i64: 8, 512>}, {transform_indices = @transform_1, window_bounds = array<i64: 512, 128>}, {transform_indices = @transform_2, window_bounds = array<i64: 1, 128>}, {transform_indices = @transform_3, window_bounds = array<i64: 8, 128>}]} {
    %c0 = arith.constant 0 : index
    %c0_0 = arith.constant 0 : index
    %0 = vector.load %arg2[%c0, %c0_0] : memref<8x512xbf16, #tpu.memory_space<vmem>>, vector<8x512xbf16>
    %cst = arith.constant 0.000000e+00 : bf16
    %1 = vector.broadcast %cst : bf16 to vector<8x512xbf16>
    %2 = arith.cmpf oge, %0, %1 : vector<8x512xbf16>
    %cst_1 = arith.constant 1.000980e-01 : bf16
    %3 = vector.broadcast %cst_1 : bf16 to vector<8x512xbf16>
    %4 = arith.mulf %0, %3 : vector<8x512xbf16>
    %5 = arith.select %2, %0, %4 : vector<8x512xi1>, vector<8x512xbf16>
    %c0_2 = arith.constant 0 : index
    %c0_3 = arith.constant 0 : index
    %6 = vector.load %arg3[%c0_2, %c0_3] : memref<512x128xbf16, #tpu.memory_space<vmem>>, vector<512x128xbf16>
    %cst_4 = arith.constant dense<0.000000e+00> : vector<8x128xf32>
    %7 = tpu.matmul %5, %6, %cst_4 {dimension_numbers = #tpu.dot_dimension_numbers<[1], [0], [0], [1], [0, 0, 1, 1], [], []>} : vector<8x512xbf16>, vector<512x128xbf16>, vector<8x128xf32> -> vector<8x128xf32>
    %c0_5 = arith.constant 0 : index
    %c0_6 = arith.constant 0 : index
    %8 = vector.load %arg4[%c0_5, %c0_6] : memref<1x128xf32, #tpu.memory_space<vmem>>, vector<1x128xf32>
    %9 = vector.broadcast %8 : vector<1x128xf32> to vector<8x128xf32>
    %10 = arith.addf %7, %9 : vector<8x128xf32>
    %c0_7 = arith.constant 0 : index
    %c0_8 = arith.constant 0 : index
    %11 = vector.load %arg5[%c0_7, %c0_8] : memref<8x128xf32, #tpu.memory_space<vmem>>, vector<8x128xf32>
    tpu.vector_store %arg5[%c0_7, %c0_8], %10 {strides = array<i32>} : memref<8x128xf32, #tpu.memory_space<vmem>>, vector<8x128xf32>,
    return
  }
  func.func @transform_0(%arg0: i32, %arg1: i32) -> (i32, i32) {
    %c0_i32 = arith.constant 0 : i32
    %c0_i32_0 = arith.constant 0 : i32
    return %arg0, %c0_i32 : i32, i32
  }
  func.func @transform_1(%arg0: i32, %arg1: i32) -> (i32, i32) {
    %c0_i32 = arith.constant 0 : i32
    %c0_i32_0 = arith.constant 0 : i32
    return %c0_i32, %arg1 : i32, i32
  }
  func.func @transform_2(%arg0: i32, %arg1: i32) -> (i32, i32) {
    %c0_i32 = arith.constant 0 : i32
    %c0_i32_0 = arith.constant 0 : i32
    return %c0_i32, %arg1 : i32, i32
  }
  func.func @transform_3(%arg0: i32, %arg1: i32) -> (i32, i32) {
    %c0_i32 = arith.constant 0 : i32
    return %arg0, %arg1 : i32, i32
  }
}

</mosaic_0001>

<llo_original>
// kernel: class_block_forward.1
$region0: #{class_block_forward.1}
  #allocation0 [shape = 'u32[]', space=smem, size = 0x4, offset = 0x4, fixed_abs, tag = 'smem constant byte address 0x4 - core index']
  #allocation1 [shape = 'u32[144,128]{1,0:T(1,128)}', space=vmem, size = 0x12000, scoped, tag = 'internal scratch']
  %s0 = inlined_call_operand.vmem [shape: bf16[8,512], index: 0, kind: input, shape index: {}]
  %s1 = inlined_call_operand.hbm [shape: bf16[512,256], index: 1, kind: input, shape index: {}]
  %s2 = inlined_call_operand.vmem [shape: f32[1,256], index: 2, kind: input, shape index: {}]
  %s3 = inlined_call_operand.hbm [shape: f32[8,256], index: 3, kind: output, shape index: {}]
  %s4 = sld [smem:[#allocation0]]
  $region49: #{class_block_forward.1} parent=0
    _
  %s6 = ssub.s32 1, %s4
  %s7 = scalar_select 0, %s6, %s4
  $region1: #{class_block_forward.1} parent=0
    #allocation2 [shape = 'u8[262144]{0}', space=vmem, size = 0x40000, scoped, tag = 'input window, operand 1']
    #allocation3 [shape = 's32[2]{0}', space=sflag, size = 0x8, scoped, tag = 'scoped memory for class_block_forward.1']
    #allocation4 [shape = 's32[2]{0}', space=sflag, size = 0x8, scoped, tag = 'scoped memory for class_block_forward.1']
    #allocation5 [shape = 'u8[8192]{0}', space=vmem, size = 0x2000, scoped, tag = 'output window, operand 0']
    %8 = vsyncpa [#allocation3], 0
    %s9 = scalar_lea.sflag [#allocation3], 1
    %10 = vsyncpa %s9, 0
    %11 = vsyncpa [#allocation4], 0
    %s12 = scalar_lea.sflag [#allocation4], 1
    %13 = vsyncpa %s12, 0
    loop: start=0, step=1, limit=4
    $region2: #{class_block_forward.1} parent=1 // loop_pre_header
      _
    $region3: #{class_block_forward.1} parent=1 // loop_header
      %s15 = sphi 0, %s19
      %p16 = scmp.ge.s32.totalorder %s15, 4
      %s22 = sphi 0, %s34
      %s23 = sphi 0, %s30
      %s24 = sphi 0, %s22
      %s25 = sphi 0, %s23
      %s26 = sphi 0, %s24
      %s27 = sphi 0, %s25
      %s37 = sphi 0, %s39
      %s40 = sphi 0, %s37
      %s41 = sphi 0, %s40
      %s57 = sphi 0, %s41
      %s63 = sphi 0, %s65
      %s66 = sphi 0, %s63
      %s67 = sphi 0, %s66
      %s83 = sphi 0, %s67
      %s89 = sphi 0, %s91
      %s92 = sphi 0, %s89
      %s93 = sphi 0, %s92
      %s109 = sphi 0, %s93
      %s117 = sphi 0, %s119
      %s120 = sphi 0, %s117
      %s121 = sphi 0, %s120
      %s137 = sphi 0, %s121
    $region4: #{class_block_forward.1} parent=1 // loop_header_branch
      %18 = sbr.rel (%p16) target = $region8
    $region5: #{class_block_forward.1} parent=1 // loop_body
      %s20 = ssub.s32 %s15, 1
      %s21 = ssub.s32 %s15, 2
      %s28 = sadd.s32 1, %s23
      %p29 = scmp.ge.s32.totalorder %s28, 2
      %s30 = scalar_select %p29, 0, %s28
      %s31 = sadd.s32 1, %s22
      %s32 = scalar_select %p29, %s31, %s22
      %p33 = scmp.ge.s32.totalorder %s32, 1
      %s34 = scalar_select %p33, 0, %s32
      %s35 = ssub.s32 %s22, %s34
      %p36 = scmp.eq.s32.totalorder %s35, 0
      %s38 = sadd.s32 %s37, 1
      %s39 = scalar_select %p36, %s37, %s38
      %p42 = pneg %p36
      %p43 = scmp.eq.s32.totalorder %s15, 1
      %p44 = por %p42, %p43
      %p45 = scmp.ne.s32.totalorder %s37, %s40
      %p46 = scmp.eq.s32.totalorder %s15, 0
      %p47 = por %p45, %p46
      %p48 = scmp.ne.s32.totalorder %s37, %s40
      %p49 = scmp.eq.s32.totalorder %s20, 1
      %p50 = por %p48, %p49
      %p51 = scmp.ne.s32.totalorder %s40, %s41
      %p52 = scmp.eq.s32.totalorder %s20, 0
      %p53 = por %p51, %p52
      %p54 = scmp.ne.s32.totalorder %s40, %s41
      %p55 = scmp.eq.s32.totalorder %s21, 1
      %p56 = por %p54, %p55
      %p58 = scmp.ne.s32.totalorder %s41, %s57
      %p59 = scmp.eq.s32.totalorder %s21, 0
      %p60 = por %p58, %p59
      %s61 = ssub.s32 %s23, %s30
      %p62 = scmp.eq.s32.totalorder %s61, 0
      %s64 = sadd.s32 %s63, 1
      %s65 = scalar_select %p62, %s63, %s64
      %p68 = pneg %p62
      %p69 = scmp.eq.s32.totalorder %s15, 1
      %p70 = por %p68, %p69
      %p71 = scmp.ne.s32.totalorder %s63, %s66
      %p72 = scmp.eq.s32.totalorder %s15, 0
      %p73 = por %p71, %p72
      %p74 = scmp.ne.s32.totalorder %s63, %s66
      %p75 = scmp.eq.s32.totalorder %s20, 1
      %p76 = por %p74, %p75
      %p77 = scmp.ne.s32.totalorder %s66, %s67
      %p78 = scmp.eq.s32.totalorder %s20, 0
      %p79 = por %p77, %p78
      %p80 = scmp.ne.s32.totalorder %s66, %s67
      %p81 = scmp.eq.s32.totalorder %s21, 1
      %p82 = por %p80, %p81
      %p84 = scmp.ne.s32.totalorder %s67, %s83
      %p85 = scmp.eq.s32.totalorder %s21, 0
      %p86 = por %p84, %p85
      %s87 = ssub.s32 %s23, %s30
      %p88 = scmp.eq.s32.totalorder %s87, 0
      %s90 = sadd.s32 %s89, 1
      %s91 = scalar_select %p88, %s89, %s90
      %p94 = pneg %p88
      %p95 = scmp.eq.s32.totalorder %s15, 1
      %p96 = por %p94, %p95
      %p97 = scmp.ne.s32.totalorder %s89, %s92
      %p98 = scmp.eq.s32.totalorder %s15, 0
      %p99 = por %p97, %p98
      %p100 = scmp.ne.s32.totalorder %s89, %s92
      %p101 = scmp.eq.s32.totalorder %s20, 1
      %p102 = por %p100, %p101
      %p103 = scmp.ne.s32.totalorder %s92, %s93
      %p104 = scmp.eq.s32.totalorder %s20, 0
      %p105 = por %p103, %p104
      %p106 = scmp.ne.s32.totalorder %s92, %s93
      %p107 = scmp.eq.s32.totalorder %s21, 1
      %p108 = por %p106, %p107
      %p110 = scmp.ne.s32.totalorder %s93, %s109
      %p111 = scmp.eq.s32.totalorder %s21, 0
      %p112 = por %p110, %p111
      %s113 = ssub.s32 %s22, %s34
      %s114 = ssub.s32 %s23, %s30
      %s115 = sor.u32 %s113, %s114
      %p116 = scmp.eq.s32.totalorder %s115, 0
      %s118 = sadd.s32 %s117, 1
      %s119 = scalar_select %p116, %s117, %s118
      %p122 = pneg %p116
      %p123 = scmp.eq.s32.totalorder %s15, 1
      %p124 = por %p122, %p123
      %p125 = scmp.ne.s32.totalorder %s117, %s120
      %p126 = scmp.eq.s32.totalorder %s15, 0
      %p127 = por %p125, %p126
      %p128 = scmp.ne.s32.totalorder %s117, %s120
      %p129 = scmp.eq.s32.totalorder %s20, 1
      %p130 = por %p128, %p129
      %p131 = scmp.ne.s32.totalorder %s120, %s121
      %p132 = scmp.eq.s32.totalorder %s20, 0
      %p133 = por %p131, %p132
      %p134 = scmp.ne.s32.totalorder %s120, %s121
      %p135 = scmp.eq.s32.totalorder %s21, 1
      %p136 = por %p134, %p135
      %p138 = scmp.ne.s32.totalorder %s121, %s137
      %p139 = scmp.eq.s32.totalorder %s21, 0
      %p140 = por %p138, %p139
      %p141 = scmp.le.s32.totalorder 1, %s15
      %p142 = scmp.lt.s32.totalorder %s15, 3
      %p143 = pnand %p141, %p142
      %p144 = pneg %p143
      // Predicated region
      $region9: #{class_block_forward.1} parent=5 // pred_check
        _
      $region10: #{class_block_forward.1} parent=5 // pred_check_branch
        %146 = sbr.rel (%p143) target = $region12
      $region11: #{class_block_forward.1} parent=5 // pred_region
        %s147 = ssub.s32 %s15, 1
        // Predicated region
        $region13: #{class_block_forward.1} parent=11 // pred_check
          %p148 = pneg %p53
        $region14: #{class_block_forward.1} parent=11 // pred_check_branch
          %150 = sbr.rel (%p148) target = $region16
        $region15: #{class_block_forward.1} parent=11 // pred_region
          %p151 = scmp.lt.s32.totalorder %s24, 0
          %s152 = scalar_select %p151, %s24, 0
          %s153 = smul.addr %s152, 4
          %s154 = smul.addr %s153, 4
          %s155 = scalar_lea.vmem %s0, %s154
        $region16: #{class_block_forward.1} parent=11 // pred_fallthru
          _
      $region12: #{class_block_forward.1} parent=5 // pred_fallthru
        _
      %p156 = scmp.lt.s32.totalorder %s15, 2
      // Predicated region
      $region17: #{class_block_forward.1} parent=5 // pred_check
        %p157 = pneg %p156
      $region18: #{class_block_forward.1} parent=5 // pred_check_branch
        %159 = sbr.rel (%p157) target = $region20
      $region19: #{class_block_forward.1} parent=5 // pred_region
        // Predicated region
        $region21: #{class_block_forward.1} parent=19 // pred_check
          %p160 = pneg %p73
        $region22: #{class_block_forward.1} parent=19 // pred_check_branch
          %162 = sbr.rel (%p160) target = $region24
        $region23: #{class_block_forward.1} parent=19 // pred_region
          %s163 = sand.u32 %s63, 1
          %s164 = scalar_lea.sflag [#allocation3], %s163
          %s165 = sand.u32 %s63, 1
          %s166 = smul.addr %s165, 256
          %s167 = scalar_lea.vmem [#allocation2], %s166
          %s169 = ssub.s32 4096, 4096
          %170 = vsyncadd %s164, %s169
          %s171 = smul.addr %s23, 64
          %s172 = scalar_lea.hbm %s1, %s171
          %s173 = sshll.u32 %s167, 4
          %s174 = int_to_ptr.vmem [resolvable:$true] %s173
          %179 = dma.hbm_to_vmem [thread:$0]  %s172, 4096, %s174, %s164, 128, 64, 4
        $region24: #{class_block_forward.1} parent=19 // pred_fallthru
          _
        // Predicated region
        $region25: #{class_block_forward.1} parent=19 // pred_check
          %p180 = pneg %p99
        $region26: #{class_block_forward.1} parent=19 // pred_check_branch
          %182 = sbr.rel (%p180) target = $region28
        $region27: #{class_block_forward.1} parent=19 // pred_region
          %p183 = scmp.lt.s32.totalorder %s23, 1
          %s184 = scalar_select %p183, %s23, 1
          %s185 = scalar_lea.vmem %s2, %s184
        $region28: #{class_block_forward.1} parent=19 // pred_fallthru
          _
      $region20: #{class_block_forward.1} parent=5 // pred_fallthru
        _
      %p186 = scmp.le.s32.totalorder 1, %s15
      %p187 = scmp.lt.s32.totalorder %s15, 3
      %p188 = pnand %p186, %p187
      %p189 = pneg %p188
      // Predicated region
      $region29: #{class_block_forward.1} parent=5 // pred_check
        _
      $region30: #{class_block_forward.1} parent=5 // pred_check_branch
        %191 = sbr.rel (%p188) target = $region32
      $region31: #{class_block_forward.1} parent=5 // pred_region
        %s192 = ssub.s32 %s15, 1
        %s193 = sand.u32 %s66, 1
        %s194 = scalar_lea.sflag [#allocation3], %s193
        %s195 = sand.u32 %s66, 1
        %s196 = smul.addr %s195, 256
        %s197 = scalar_lea.vmem [#allocation2], %s196
        // Predicated region
        $region33: #{class_block_forward.1} parent=31 // pred_check
          %p198 = pneg %p79
        $region34: #{class_block_forward.1} parent=31 // pred_check_branch
          %200 = sbr.rel (%p198) target = $region36
        $region35: #{class_block_forward.1} parent=31 // pred_region
          %201 = dma.done %s194, 4096
        $region36: #{class_block_forward.1} parent=31 // pred_fallthru
          _
        %p202 = scmp.lt.s32.totalorder %s24, 0
        %s203 = scalar_select %p202, %s24, 0
        %s204 = smul.addr %s203, 4
        %s205 = smul.addr %s204, 4
        %s206 = scalar_lea.vmem %s0, %s205
        %p207 = pneg %p53
        %p208 = pneg %p50
        %s209 = sand.u32 %s66, 1
        %s210 = scalar_lea.sflag [#allocation3], %s209
        %s211 = sand.u32 %s66, 1
        %s212 = smul.addr %s211, 256
        %s213 = scalar_lea.vmem [#allocation2], %s212
        %p214 = pneg %p79
        %p215 = pneg %p76
        %p216 = scmp.lt.s32.totalorder %s25, 1
        %s217 = scalar_select %p216, %s25, 1
        %s218 = scalar_lea.vmem %s2, %s217
        %p219 = pneg %p105
        %p220 = pneg %p102
        %p221 = pneg %p133
        %p222 = pneg %p130
        %s223 = sand.u32 %s120, 1
        %s224 = scalar_lea.sflag [#allocation4], %s223
        %s225 = sand.u32 %s120, 1
        %s226 = smul.addr %s225, 8
        %s227 = scalar_lea.vmem [#allocation5], %s226
        %p228 = scmp.lt.s32.totalorder %s24, 0
        %s229 = scalar_select %p228, %s24, 0
        %s230 = smul.addr %s229, 4
        %s231 = smul.addr %s230, 4
        %s232 = scalar_lea.vmem %s0, %s231
        %p233 = scmp.lt.s32.totalorder %s25, 1
        %s234 = scalar_select %p233, %s25, 1
        %s235 = scalar_lea.vmem %s2, %s234
        %v238 = vld [vmem:[%s232] sm:$0xff]
        %v239 = vld [vmem:[%s232 + $0x8] sm:$0xff]
        %vm240 = vcmp.ge.bf16.partialorder %v238, 0
        %vm241 = vcmp.ge.bf16.partialorder %v239, 0
        %v242 = vmul.bf16 %v238, 1036860877
        %v243 = vmul.bf16 %v239, 1036860877
        %v244 = vsel %vm240, %v238, %v242
        %v245 = vsel %vm241, %v239, %v243
        %v246 = vld [vmem:[%s197] sm:$0xf]
        %v247 = vld [vmem:[%s197 + $0x4] sm:$0xf]
        %v248 = vld [vmem:[%s197 + $0x8] sm:$0xf]
        %v249 = vld [vmem:[%s197 + $0xc] sm:$0xf]
        %v250 = vld [vmem:[%s197 + $0x10] sm:$0xf]
        %v251 = vld [vmem:[%s197 + $0x14] sm:$0xf]
        %v252 = vld [vmem:[%s197 + $0x18] sm:$0xf]
        %v253 = vld [vmem:[%s197 + $0x1c] sm:$0xf]
        %v254 = vld [vmem:[%s197 + $0x20] sm:$0xf]
        %v255 = vld [vmem:[%s197 + $0x24] sm:$0xf]
        %v256 = vld [vmem:[%s197 + $0x28] sm:$0xf]
        %v257 = vld [vmem:[%s197 + $0x2c] sm:$0xf]
        %v258 = vld [vmem:[%s197 + $0x30] sm:$0xf]
        %v259 = vld [vmem:[%s197 + $0x34] sm:$0xf]
        %v260 = vld [vmem:[%s197 + $0x38] sm:$0xf]
        %v261 = vld [vmem:[%s197 + $0x3c] sm:$0xf]
        %v262 = vld [vmem:[%s197 + $0x40] sm:$0xf]
        %v263 = vld [vmem:[%s197 + $0x44] sm:$0xf]
        %v264 = vld [vmem:[%s197 + $0x48] sm:$0xf]
        %v265 = vld [vmem:[%s197 + $0x4c] sm:$0xf]
        %v266 = vld [vmem:[%s197 + $0x50] sm:$0xf]
        %v267 = vld [vmem:[%s197 + $0x54] sm:$0xf]
        %v268 = vld [vmem:[%s197 + $0x58] sm:$0xf]
        %v269 = vld [vmem:[%s197 + $0x5c] sm:$0xf]
        %v270 = vld [vmem:[%s197 + $0x60] sm:$0xf]
        %v271 = vld [vmem:[%s197 + $0x64] sm:$0xf]
        %v272 = vld [vmem:[%s197 + $0x68] sm:$0xf]
        %v273 = vld [vmem:[%s197 + $0x6c] sm:$0xf]
        %v274 = vld [vmem:[%s197 + $0x70] sm:$0xf]
        %v275 = vld [vmem:[%s197 + $0x74] sm:$0xf]
        %v276 = vld [vmem:[%s197 + $0x78] sm:$0xf]
        %v277 = vld [vmem:[%s197 + $0x7c] sm:$0xf]
        %v278 = vld [vmem:[%s197 + $0x80] sm:$0xf]
        %v279 = vld [vmem:[%s197 + $0x84] sm:$0xf]
        %v280 = vld [vmem:[%s197 + $0x88] sm:$0xf]
        %v281 = vld [vmem:[%s197 + $0x8c] sm:$0xf]
        %v282 = vld [vmem:[%s197 + $0x90] sm:$0xf]
        %v283 = vld [vmem:[%s197 + $0x94] sm:$0xf]
        %v284 = vld [vmem:[%s197 + $0x98] sm:$0xf]
        %v285 = vld [vmem:[%s197 + $0x9c] sm:$0xf]
        %v286 = vld [vmem:[%s197 + $0xa0] sm:$0xf]
        %v287 = vld [vmem:[%s197 + $0xa4] sm:$0xf]
        %v288 = vld [vmem:[%s197 + $0xa8] sm:$0xf]
        %v289 = vld [vmem:[%s197 + $0xac] sm:$0xf]
        %v290 = vld [vmem:[%s197 + $0xb0] sm:$0xf]
        %v291 = vld [vmem:[%s197 + $0xb4] sm:$0xf]
        %v292 = vld [vmem:[%s197 + $0xb8] sm:$0xf]
        %v293 = vld [vmem:[%s197 + $0xbc] sm:$0xf]
        %v294 = vld [vmem:[%s197 + $0xc0] sm:$0xf]
        %v295 = vld [vmem:[%s197 + $0xc4] sm:$0xf]
        %v296 = vld [vmem:[%s197 + $0xc8] sm:$0xf]
        %v297 = vld [vmem:[%s197 + $0xcc] sm:$0xf]
        %v298 = vld [vmem:[%s197 + $0xd0] sm:$0xf]
        %v299 = vld [vmem:[%s197 + $0xd4] sm:$0xf]
        %v300 = vld [vmem:[%s197 + $0xd8] sm:$0xf]
        %v301 = vld [vmem:[%s197 + $0xdc] sm:$0xf]
        %v302 = vld [vmem:[%s197 + $0xe0] sm:$0xf]
        %v303 = vld [vmem:[%s197 + $0xe4] sm:$0xf]
        %v304 = vld [vmem:[%s197 + $0xe8] sm:$0xf]
        %v305 = vld [vmem:[%s197 + $0xec] sm:$0xf]
        %v306 = vld [vmem:[%s197 + $0xf0] sm:$0xf]
        %v307 = vld [vmem:[%s197 + $0xf4] sm:$0xf]
        %v308 = vld [vmem:[%s197 + $0xf8] sm:$0xf]
        %v309 = vld [vmem:[%s197 + $0xfc] sm:$0xf]
        %v310 = vld [vmem:[%s235] sm:$0x1]
        %v312 = vlaneseq
        %v313 = vshrl.u32 %v312, 7
        %v314 = vsub.s32 0, %v313
        %v315 = vrot.slane %v310, %v314
        %v319 = vunpack.c.l.b16 %v244
        %v320 = vunpack.c.h.b16 %v244
        %v321 = vunpack.c.l.b16 %v245
        %v322 = vunpack.c.h.b16 %v245
        %v323 = vpack.c.b16 %v319, %v319
        %v324 = vpack.c.b16 %v320, %v320
        %v325 = vpack.c.b16 %v321, %v321
        %v326 = vpack.c.b16 %v322, %v322
        %v395 = vunpack.c.l.b16 %v246
        %v396 = vunpack.c.l.b16 %v247
        %v397 = vunpack.c.l.b16 %v248
        %v398 = vunpack.c.l.b16 %v249
        %v399 = vunpack.c.l.b16 %v250
        %v400 = vunpack.c.l.b16 %v251
        %v401 = vunpack.c.l.b16 %v252
        %v402 = vunpack.c.l.b16 %v253
        %v403 = vunpack.c.l.b16 %v254
        %v404 = vunpack.c.l.b16 %v255
        %v405 = vunpack.c.l.b16 %v256
        %v406 = vunpack.c.l.b16 %v257
        %v407 = vunpack.c.l.b16 %v258
        %v408 = vunpack.c.l.b16 %v259
        %v409 = vunpack.c.l.b16 %v260
        %v410 = vunpack.c.l.b16 %v261
        %v411 = vunpack.c.l.b16 %v262
        %v412 = vunpack.c.l.b16 %v263
        %v413 = vunpack.c.l.b16 %v264
        %v414 = vunpack.c.l.b16 %v265
        %v415 = vunpack.c.l.b16 %v266
        %v416 = vunpack.c.l.b16 %v267
        %v417 = vunpack.c.l.b16 %v268
        %v418 = vunpack.c.l.b16 %v269
        %v419 = vunpack.c.l.b16 %v270
        %v420 = vunpack.c.l.b16 %v271
        %v421 = vunpack.c.l.b16 %v272
        %v422 = vunpack.c.l.b16 %v273
        %v423 = vunpack.c.l.b16 %v274
        %v424 = vunpack.c.l.b16 %v275
        %v425 = vunpack.c.l.b16 %v276
        %v426 = vunpack.c.l.b16 %v277
        %v427 = vunpack.c.l.b16 %v278
        %v428 = vunpack.c.l.b16 %v279
        %v429 = vunpack.c.l.b16 %v280
        %v430 = vunpack.c.l.b16 %v281
        %v431 = vunpack.c.l.b16 %v282
        %v432 = vunpack.c.l.b16 %v283
        %v433 = vunpack.c.l.b16 %v284
        %v434 = vunpack.c.l.b16 %v285
        %v435 = vunpack.c.l.b16 %v286
        %v436 = vunpack.c.l.b16 %v287
        %v437 = vunpack.c.l.b16 %v288
        %v438 = vunpack.c.l.b16 %v289
        %v439 = vunpack.c.l.b16 %v290
        %v440 = vunpack.c.l.b16 %v291
        %v441 = vunpack.c.l.b16 %v292
        %v442 = vunpack.c.l.b16 %v293
        %v443 = vunpack.c.l.b16 %v294
        %v444 = vunpack.c.l.b16 %v295
        %v445 = vunpack.c.l.b16 %v296
        %v446 = vunpack.c.l.b16 %v297
        %v447 = vunpack.c.l.b16 %v298
        %v448 = vunpack.c.l.b16 %v299
        %v449 = vunpack.c.l.b16 %v300
        %v450 = vunpack.c.l.b16 %v301
        %v451 = vunpack.c.l.b16 %v302
        %v452 = vunpack.c.l.b16 %v303
        %v453 = vunpack.c.l.b16 %v304
        %v454 = vunpack.c.l.b16 %v305
        %v455 = vunpack.c.l.b16 %v306
        %v456 = vunpack.c.l.b16 %v307
        %v457 = vunpack.c.l.b16 %v308
        %v458 = vunpack.c.l.b16 %v309
        %v459 = vpack.c.b16 %v396, %v395
        %v460 = vpack.c.b16 %v398, %v397
        %v461 = vpack.c.b16 %v400, %v399
        %v462 = vpack.c.b16 %v402, %v401
        %v463 = vpack.c.b16 %v404, %v403
        %v464 = vpack.c.b16 %v406, %v405
        %v465 = vpack.c.b16 %v408, %v407
        %v466 = vpack.c.b16 %v410, %v409
        %v467 = vpack.c.b16 %v412, %v411
        %v468 = vpack.c.b16 %v414, %v413
        %v469 = vpack.c.b16 %v416, %v415
        %v470 = vpack.c.b16 %v418, %v417
        %v471 = vpack.c.b16 %v420, %v419
        %v472 = vpack.c.b16 %v422, %v421
        %v473 = vpack.c.b16 %v424, %v423
        %v474 = vpack.c.b16 %v426, %v425
        %v475 = vpack.c.b16 %v428, %v427
        %v476 = vpack.c.b16 %v430, %v429
        %v477 = vpack.c.b16 %v432, %v431
        %v478 = vpack.c.b16 %v434, %v433
        %v479 = vpack.c.b16 %v436, %v435
        %v480 = vpack.c.b16 %v438, %v437
        %v481 = vpack.c.b16 %v440, %v439
        %v482 = vpack.c.b16 %v442, %v441
        %v483 = vpack.c.b16 %v444, %v443
        %v484 = vpack.c.b16 %v446, %v445
        %v485 = vpack.c.b16 %v448, %v447
        %v486 = vpack.c.b16 %v450, %v449
        %v487 = vpack.c.b16 %v452, %v451
        %v488 = vpack.c.b16 %v454, %v453
        %v489 = vpack.c.b16 %v456, %v455
        %v490 = vpack.c.b16 %v458, %v457
        %523 = vmatprep.subr.bf16.mxu0 0
        %524 = vmatpush1.bf16.msra.mxu0 %v466
        %525 = vmatprep.subr.bf16.mxu0 0
        %526 = vmatpush1.bf16.msra.mxu0 %v465
        %527 = vmatprep.subr.bf16.mxu0 0
        %528 = vmatpush1.bf16.msra.mxu0 %v464
        %529 = vmatprep.subr.bf16.mxu0 0
        %530 = vmatpush1.bf16.msra.mxu0 %v463
        %531 = vmatprep.subr.bf16.mxu0 0
        %532 = vmatpush1.bf16.msra.mxu0 %v462
        %533 = vmatprep.subr.bf16.mxu0 0
        %534 = vmatpush1.bf16.msra.mxu0 %v461
        %535 = vmatprep.subr.bf16.mxu0 0
        %536 = vmatpush1.bf16.msra.mxu0 %v460
        %537 = vmatprep.subr.bf16.mxu0 0
        %538 = vmatpush1.bf16.msra.mxu0 %v459
        %539 = vmatprep.subr.bf16.mxu0 0
        %540 = vmatpush2.bf16.msra.mxu0 %v474
        %541 = vmatprep.subr.bf16.mxu0 0
        %542 = vmatpush2.bf16.msra.mxu0 %v473
        %543 = vmatprep.subr.bf16.mxu0 0
        %544 = vmatpush2.bf16.msra.mxu0 %v472
        %545 = vmatprep.subr.bf16.mxu0 0
        %546 = vmatpush2.bf16.msra.mxu0 %v471
        %547 = vmatprep.subr.bf16.mxu0 0
        %548 = vmatpush2.bf16.msra.mxu0 %v470
        %549 = vmatprep.subr.bf16.mxu0 0
        %550 = vmatpush2.bf16.msra.mxu0 %v469
        %551 = vmatprep.subr.bf16.mxu0 0
        %552 = vmatpush2.bf16.msra.mxu0 %v468
        %553 = vmatprep.subr.bf16.mxu0 0
        %554 = vmatpush2.bf16.msra.mxu0 %v467
        %555 = vmatprep.mubr.bf16.mxu0 %v324
        %556 = vmatmul.mubr.bf16.gmra.mxu0 %v323
        %v557 = vpop.f32.mrf.mxu0
        %v558 = vadd.f32 %v315, %v557
        %v559 = vpop.f32.mrf.mxu0
        %v560 = vpop.f32.mrf.mxu0
        %v561 = vpop.f32.mrf.mxu0
        %562 = vdwg.mxu0
        %563 = vmatprep.subr.bf16.mxu0 0
        %564 = vmatpush1.bf16.msra.mxu0 %v482
        %565 = vmatprep.subr.bf16.mxu0 0
        %566 = vmatpush1.bf16.msra.mxu0 %v481
        %567 = vmatprep.subr.bf16.mxu0 0
        %568 = vmatpush1.bf16.msra.mxu0 %v480
        %569 = vmatprep.subr.bf16.mxu0 0
        %570 = vmatpush1.bf16.msra.mxu0 %v479
        %571 = vmatprep.subr.bf16.mxu0 0
        %572 = vmatpush1.bf16.msra.mxu0 %v478
        %573 = vmatprep.subr.bf16.mxu0 0
        %574 = vmatpush1.bf16.msra.mxu0 %v477
        %575 = vmatprep.subr.bf16.mxu0 0
        %576 = vmatpush1.bf16.msra.mxu0 %v476
        %577 = vmatprep.subr.bf16.mxu0 0
        %578 = vmatpush1.bf16.msra.mxu0 %v475
        %579 = vmatprep.subr.bf16.mxu0 0
        %580 = vmatpush2.bf16.msra.mxu0 %v490
        %581 = vmatprep.subr.bf16.mxu0 0
        %582 = vmatpush2.bf16.msra.mxu0 %v489
        %583 = vmatprep.subr.bf16.mxu0 0
        %584 = vmatpush2.bf16.msra.mxu0 %v488
        %585 = vmatprep.subr.bf16.mxu0 0
        %586 = vmatpush2.bf16.msra.mxu0 %v487
        %587 = vmatprep.subr.bf16.mxu0 0
        %588 = vmatpush2.bf16.msra.mxu0 %v486
        %589 = vmatprep.subr.bf16.mxu0 0
        %590 = vmatpush2.bf16.msra.mxu0 %v485
        %591 = vmatprep.subr.bf16.mxu0 0
        %592 = vmatpush2.bf16.msra.mxu0 %v484
        %593 = vmatprep.subr.bf16.mxu0 0
        %594 = vmatpush2.bf16.msra.mxu0 %v483
        %595 = vmatprep.mubr.bf16.mxu0 %v326
        %596 = vmatmul.mubr.bf16.gmra.mxu0 %v325
        %v597 = vpop.f32.mrf.mxu0
        %v598 = vadd.f32 %v558, %v597
        %v599 = vpop.f32.mrf.mxu0
        %v600 = vpop.f32.mrf.mxu0
        %v601 = vpop.f32.mrf.mxu0
        %602 = vdwg.mxu0
        %603 = vst [vmem:[%s227] sm:$0xff] %v598
        %s604 = sand.u32 %s120, 1
        %s605 = scalar_lea.sflag [#allocation4], %s604
        %s606 = sand.u32 %s120, 1
        %s607 = smul.addr %s606, 8
        %s608 = scalar_lea.vmem [#allocation5], %s607
        // Predicated region
        $region37: #{class_block_forward.1} parent=31 // pred_check
          %p609 = pneg %p130
        $region38: #{class_block_forward.1} parent=31 // pred_check_branch
          %611 = sbr.rel (%p609) target = $region40
        $region39: #{class_block_forward.1} parent=31 // pred_region
          %s613 = ssub.s32 128, 128
          %614 = vsyncadd %s605, %s613
          %s615 = smul.addr %s24, 2
          %s616 = sadd.s32 %s25, %s615
          %s617 = smul.addr %s616, 128
          %s618 = scalar_lea.hbm %s3, %s617
          %s620 = sshll.u32 %s608, 4
          %s621 = int_to_ptr.vmem [resolvable:$true] %s620
          %623 = dma.vmem_to_hbm [thread:$0]  %s621, 128, %s618, %s605
        $region40: #{class_block_forward.1} parent=31 // pred_fallthru
          _
      $region32: #{class_block_forward.1} parent=5 // pred_fallthru
        _
      %p624 = scmp.le.s32.totalorder 2, %s15
      // Predicated region
      $region41: #{class_block_forward.1} parent=5 // pred_check
        %p625 = pneg %p624
      $region42: #{class_block_forward.1} parent=5 // pred_check_branch
        %627 = sbr.rel (%p625) target = $region44
      $region43: #{class_block_forward.1} parent=5 // pred_region
        %s628 = ssub.s32 %s15, 2
        // Predicated region
        $region45: #{class_block_forward.1} parent=43 // pred_check
          %p629 = pneg %p136
        $region46: #{class_block_forward.1} parent=43 // pred_check_branch
          %631 = sbr.rel (%p629) target = $region48
        $region47: #{class_block_forward.1} parent=43 // pred_region
          %s632 = sand.u32 %s121, 1
          %s633 = scalar_lea.sflag [#allocation4], %s632
          %s634 = sand.u32 %s121, 1
          %s635 = smul.addr %s634, 8
          %s636 = scalar_lea.vmem [#allocation5], %s635
          %637 = dma.done %s633, 128
        $region48: #{class_block_forward.1} parent=43 // pred_fallthru
          _
      $region44: #{class_block_forward.1} parent=5 // pred_fallthru
        _
    $region6: #{class_block_forward.1} parent=1 // loop_footer
      %s19 = sadd.s32 1, %s15
    $region7: #{class_block_forward.1} parent=1 // loop_footer_branch
      %14 = sbr.rel target = $region3
    $region8: #{class_block_forward.1} parent=1 // loop_exit
      _
    %638 = vsyncpa [#allocation3], 1
    %s639 = scalar_lea.sflag [#allocation3], 1
    %640 = vsyncpa %s639, 1
    %641 = vsyncpa [#allocation4], 1
    %s642 = scalar_lea.sflag [#allocation4], 1
    %643 = vsyncpa %s642, 1

</llo_original>
